<compile_context>
chip_gen: v7x
topology: tpu7x:2x2x1
jax: 0.10.0
libtpu: 0.0.40
codegen_flags: <defaults>
</compile_context>

<pallas_src>
import functools

import jax
import jax.numpy as jnp
from jax.experimental import pallas as pl
from jax.experimental.pallas import tpu as pltpu

LANES = 128
DEFAULT_EPS = 1e-6
_CHUNK = 512            # rows per inner accumulation chunk (bounds VMEM temps)


# ----------------------------------------------------------------------------
# Kernel
# ----------------------------------------------------------------------------
def _rmse_partial_kernel(x_ref, y_ref, o_ref, acc_ref, *, rows, chunk):
    """One grid step: accumulate sum((x - y)^2) for this row tile.

    x_ref, y_ref : (tile_rows, 128) VMEM blocks in the inputs' native dtype
    o_ref        : (1, 1) f32 per-split partial sum, written on the split's
                   last step only
    acc_ref      : (8, 128) f32 VMEM scratch, resident across the reduction axis
    """
    split = pl.program_id(0)
    step = pl.program_id(1)
    steps = pl.num_programs(1)
    tile_rows = x_ref.shape[0]

    @pl.when(step == 0)
    def _():
        acc_ref[...] = jnp.zeros_like(acc_ref)

    # Intended (unclamped) global row offset of this block.  The index_map
    # clamps the DMA to the last in-bounds block, but the validity mask uses
    # the *intended* offset, so clamped / partial blocks contribute zero.
    row0 = (split * steps + step) * tile_rows

    def accumulate(base):
        xs = x_ref[pl.ds(base, chunk), :].astype(jnp.float32)
        ys = y_ref[pl.ds(base, chunk), :].astype(jnp.float32)
        d = xs - ys
        # n is a multiple of 128 by construction, so validity is per-row.
        # Mask before accumulating: OOB rows of a partial block are garbage.
        local = jax.lax.broadcasted_iota(jnp.int32, (chunk, 1), 0)
        valid = (row0 + base + local) < rows
        d2 = jnp.where(valid, d * d, 0.0)
        if chunk % 8 == 0:
            # Sublane-aligned reduce to (8, 128): pure VPU vreg adds, no XLU.
            acc_ref[...] += jnp.sum(d2.reshape(chunk // 8, 8, LANES), axis=0)
        else:
            # Tiny single-block case (rows not sublane aligned).
            acc_ref[0:1, :] += jnp.sum(d2, axis=0, keepdims=True)

    num_chunks = tile_rows // chunk
    if num_chunks <= 1:
        accumulate(0)
    else:
        @pl.loop(0, num_chunks)
        def _(c):
            accumulate(pl.multiple_of(c * chunk, chunk))

    @pl.when(step == steps - 1)
    def _():
        # Single cross-lane/sublane collapse per split.
        o_ref[...] = jnp.sum(acc_ref[...], keepdims=True)


# ----------------------------------------------------------------------------
# Wrapper
# ----------------------------------------------------------------------------
def rmse_loss(x, y, eps=DEFAULT_EPS, max_tile_rows=4096, n_splits=2):
    """sqrt(mean((x - y)**2) + eps) over all elements, as one Pallas kernel."""
    assert x.shape == y.shape, (x.shape, y.shape)
    n = x.size
    assert n > 0

    # Stream inputs in their native dtype and upcast inside the kernel (halves
    # HBM traffic for bf16/f16).  Mixed / unsupported dtypes fall back to f32.
    if x.dtype != y.dtype or x.dtype not in (jnp.float32, jnp.bfloat16, jnp.float16):
        x = x.astype(jnp.float32)
        y = y.astype(jnp.float32)
    itemsize = jnp.dtype(x.dtype).itemsize
    granule = 8 * (4 // itemsize)          # sublane granule: 8 f32, 16 bf16/f16

    xf = jnp.ravel(x)
    yf = jnp.ravel(y)
    if n % LANES != 0:
        # TODO(synk): lane-misaligned sizes pay one extra HBM pass for this
        # minimal pad; aligned sizes (the common case) stream with zero copies.
        pad = LANES - n % LANES
        xf = jnp.pad(xf, (0, pad))
        yf = jnp.pad(yf, (0, pad))
    rows = xf.size // LANES
    x2 = xf.reshape(rows, LANES)           # free bitcast (row-major contiguous)
    y2 = yf.reshape(rows, LANES)

    # Tile sizing: one full-extent block for small inputs, otherwise a large
    # granule-aligned tile (default 4096 rows = 2 MiB/input f32).
    if rows <= max_tile_rows:
        tile_rows = rows
    else:
        tile_rows = max(granule, (int(max_tile_rows) // granule) * granule)
    chunk = _CHUNK if tile_rows % _CHUNK == 0 else tile_rows

    nblocks = pl.cdiv(rows, tile_rows)
    n_splits = max(1, min(int(n_splits), nblocks))
    steps = pl.cdiv(nblocks, n_splits)

    def in_map(s, i):
        # Clamp so trailing (fully out-of-range) steps of the last split
        # re-read the final valid block; the in-kernel mask zeroes them out.
        return (jnp.minimum(s * steps + i, nblocks - 1), 0)

    kernel = functools.partial(_rmse_partial_kernel, rows=rows, chunk=chunk)

    partials = pl.pallas_call(
        kernel,
        out_shape=jax.ShapeDtypeStruct((n_splits, 1), jnp.float32),
        grid_spec=pltpu.PrefetchScalarGridSpec(
            num_scalar_prefetch=0,
            grid=(n_splits, steps),
            in_specs=[pl.BlockSpec((tile_rows, LANES), in_map),
                      pl.BlockSpec((tile_rows, LANES), in_map)],
            out_specs=pl.BlockSpec((1, 1), lambda s, i: (s, 0)),
            scratch_shapes=[pltpu.VMEM((8, LANES), jnp.float32)],
        ),
        compiler_params=pltpu.CompilerParams(
            # Row-tile axis is the reduction; the split axis shards across
            # TensorCores on megacore parts (v7x), otherwise it is a trivial
            # 2-iteration outer loop.
            dimension_semantics=("parallel", "arbitrary"),
            vmem_limit_bytes=32 * 1024 * 1024,
        ),
    )(x2, y2)

    # Tiny epilogue: combine per-split sums of squares, divide by the TRUE
    # element count, add eps, sqrt — exactly the PyTorch module semantics.
    return jnp.sqrt(jnp.sum(partials) / n + eps)


def rmse_reference(x, y, eps=DEFAULT_EPS):
    return jnp.sqrt(jnp.mean((x - y) ** 2) + eps)


# ----------------------------------------------------------------------------
if __name__ == "__main__":
    key = jax.random.PRNGKey(0)
    k1, k2, k3, k4, k5, k6 = jax.random.split(key, 6)

    # 1) Lane-aligned f32 case (no pad, zero-copy streaming, single block).
    x = jax.random.normal(k1, (256, 16), jnp.float32)
    y = x + 0.1 * jax.random.normal(k2, (256, 16), jnp.float32)
    loss = jax.block_until_ready(jax.jit(rmse_loss)(x, y))
    ref = rmse_reference(x, y)
    assert loss.shape == (), loss.shape
    assert jnp.allclose(loss, ref, atol=1e-5, rtol=1e-5), (float(loss), float(ref))

    # 2) Ragged f32 shape (minimal pad) + multi-step, 2-way-split grid.
    a = jax.random.normal(k3, (40, 100), jnp.float32)
    b = jax.random.normal(k4, (40, 100), jnp.float32)
    loss2 = jax.block_until_ready(
        jax.jit(functools.partial(rmse_loss, max_tile_rows=8))(a, b))
    ref2 = rmse_reference(a, b)
    assert jnp.allclose(loss2, ref2, atol=1e-5, rtol=1e-5), (float(loss2), float(ref2))

    # 3) bf16 native-dtype streaming + partial last block + clamped split tail.
    c = jax.random.normal(k5, (33, 128), jnp.float32).astype(jnp.bfloat16)
    d = jax.random.normal(k6, (33, 128), jnp.float32).astype(jnp.bfloat16)
    loss3 = jax.block_until_ready(
        jax.jit(functools.partial(rmse_loss, max_tile_rows=16))(c, d))
    ref3 = rmse_reference(c.astype(jnp.float32), d.astype(jnp.float32))
    assert jnp.allclose(loss3, ref3, atol=1e-4, rtol=1e-4), (float(loss3), float(ref3))

    print("KERNEL_OK")
</pallas_src>

<mosaic_0001>
module attributes {stable_mosaic.version = 11 : i64} {
  func.func @_rmse_partial_kernel(%arg0: i32, %arg1: i32, %arg2: memref<32x128xf32, #tpu.memory_space<vmem>>, %arg3: memref<32x128xf32, #tpu.memory_space<vmem>>, %arg4: memref<1x1xf32, #tpu.memory_space<vmem>>, %arg5: memref<8x128xf32, #tpu.memory_space<vmem>>) attributes {dimension_semantics = [#tpu.dimension_semantics<parallel>, #tpu.dimension_semantics<arbitrary>], iteration_bounds = array<i64: 1, 1>, scalar_prefetch = 0 : i64, scratch_operands = 1 : i64, tpu.core_type = #tpu.core_type<tc>, window_params = [{transform_indices = @transform_0, window_bounds = array<i64: 32, 128>}, {transform_indices = @transform_1, window_bounds = array<i64: 32, 128>}, {transform_indices = @transform_2, window_bounds = array<i64: 1, 1>}]} {
    %c0_i32 = arith.constant 0 : i32
    %0 = arith.cmpi eq, %arg1, %c0_i32 : i32
    %1 = arith.extui %0 : i1 to i32
    %c0_i32_0 = arith.constant 0 : i32
    %2 = arith.cmpi ne, %1, %c0_i32_0 : i32
    scf.if %2 {
      %cst_13 = arith.constant 0.000000e+00 : f32
      %28 = vector.broadcast %cst_13 : f32 to vector<8x128xf32>
      %c0_14 = arith.constant 0 : index
      %c0_15 = arith.constant 0 : index
      %29 = vector.load %arg5[%c0_14, %c0_15] : memref<8x128xf32, #tpu.memory_space<vmem>>, vector<8x128xf32>
      tpu.vector_store %arg5[%c0_14, %c0_15], %28 {strides = array<i32>} : memref<8x128xf32, #tpu.memory_space<vmem>>, vector<8x128xf32>,
    } else {
    }
    %c1_i32 = arith.constant 1 : i32
    %3 = arith.muli %arg0, %c1_i32 : i32
    %4 = arith.addi %3, %arg1 : i32
    %c32_i32 = arith.constant 32 : i32
    %5 = arith.muli %4, %c32_i32 : i32
    %c0 = arith.constant 0 : index
    %c0_1 = arith.constant 0 : index
    %6 = vector.load %arg2[%c0, %c0_1] : memref<32x128xf32, #tpu.memory_space<vmem>>, vector<32x128xf32>
    %c0_2 = arith.constant 0 : index
    %c0_3 = arith.constant 0 : index
    %7 = vector.load %arg3[%c0_2, %c0_3] : memref<32x128xf32, #tpu.memory_space<vmem>>, vector<32x128xf32>
    %8 = arith.subf %6, %7 : vector<32x128xf32>
    %9 = tpu.iota {dimensions = array<i32: 0>} : vector<32x1xi32>
    %c0_i32_4 = arith.constant 0 : i32
    %10 = arith.addi %5, %c0_i32_4 : i32
    %11 = vector.broadcast %10 : i32 to vector<32x1xi32>
    %12 = arith.addi %11, %9 : vector<32x1xi32>
    %c32_i32_5 = arith.constant 32 : i32
    %13 = vector.broadcast %c32_i32_5 : i32 to vector<32x1xi32>
    %14 = arith.cmpi slt, %12, %13 : vector<32x1xi32>
    %15 = arith.mulf %8, %8 : vector<32x128xf32>
    %cst = arith.constant 0.000000e+00 : f32
    %16 = vector.shape_cast %14 : vector<32x1xi1> to vector<32x1xi1>
    %17 = vector.broadcast %16 : vector<32x1xi1> to vector<32x128xi1>
    %18 = vector.broadcast %cst : f32 to vector<32x128xf32>
    %19 = arith.select %17, %15, %18 : vector<32x128xi1>, vector<32x128xf32>
    %c0_6 = arith.constant 0 : index
    %c0_7 = arith.constant 0 : index
    %20 = vector.load %arg5[%c0_6, %c0_7] : memref<8x128xf32, #tpu.memory_space<vmem>>, vector<8x128xf32>
    %21 = vector.shape_cast %19 : vector<32x128xf32> to vector<4x8x128xf32>
    %cst_8 = arith.constant dense<0.000000e+00> : vector<8x128xf32>
    %22 = vector.multi_reduction <add>, %21, %cst_8 [0] : vector<4x8x128xf32> to vector<8x128xf32>
    %23 = arith.addf %20, %22 : vector<8x128xf32>
    %c0_9 = arith.constant 0 : index
    %c0_10 = arith.constant 0 : index
    %24 = vector.load %arg5[%c0_9, %c0_10] : memref<8x128xf32, #tpu.memory_space<vmem>>, vector<8x128xf32>
    tpu.vector_store %arg5[%c0_9, %c0_10], %23 {strides = array<i32>} : memref<8x128xf32, #tpu.memory_space<vmem>>, vector<8x128xf32>,
    %c0_i32_11 = arith.constant 0 : i32
    %25 = arith.cmpi eq, %arg1, %c0_i32_11 : i32
    %26 = arith.extui %25 : i1 to i32
    %c0_i32_12 = arith.constant 0 : i32
    %27 = arith.cmpi ne, %26, %c0_i32_12 : i32
    scf.if %27 {
      %c0_13 = arith.constant 0 : index
      %c0_14 = arith.constant 0 : index
      %28 = vector.load %arg5[%c0_13, %c0_14] : memref<8x128xf32, #tpu.memory_space<vmem>>, vector<8x128xf32>
      %29 = vector.shape_cast %28 : vector<8x128xf32> to vector<1x8x128xf32>
      %cst_15 = arith.constant dense<0.000000e+00> : vector<1xf32>
      %30 = vector.multi_reduction <add>, %29, %cst_15 [1, 2] : vector<1x8x128xf32> to vector<1xf32>
      %31 = vector.shape_cast %30 : vector<1xf32> to vector<1x1x1xf32>
      %32 = vector.extract %31[0, 0, 0] : f32 from vector<1x1x1xf32>
      %33 = vector.broadcast %32 : f32 to vector<1x1xf32>
      %c0_16 = arith.constant 0 : index
      %c0_17 = arith.constant 0 : index
      %34 = vector.load %arg4[%c0_16, %c0_17] : memref<1x1xf32, #tpu.memory_space<vmem>>, vector<1x1xf32>
      tpu.vector_store %arg4[%c0_16, %c0_17], %33 {strides = array<i32>} : memref<1x1xf32, #tpu.memory_space<vmem>>, vector<1x1xf32>,
    } else {
    }
    return
  }
  func.func @transform_0(%arg0: i32, %arg1: i32) -> (i32, i32) {
    %c1_i32 = arith.constant 1 : i32
    %0 = arith.muli %arg0, %c1_i32 : i32
    %1 = arith.addi %0, %arg1 : i32
    %c0_i32 = arith.constant 0 : i32
    %2 = arith.minsi %1, %c0_i32 : i32
    %c0_i32_0 = arith.constant 0 : i32
    %c0_i32_1 = arith.constant 0 : i32
    return %2, %c0_i32_0 : i32, i32
  }
  func.func @transform_1(%arg0: i32, %arg1: i32) -> (i32, i32) {
    %c1_i32 = arith.constant 1 : i32
    %0 = arith.muli %arg0, %c1_i32 : i32
    %1 = arith.addi %0, %arg1 : i32
    %c0_i32 = arith.constant 0 : i32
    %2 = arith.minsi %1, %c0_i32 : i32
    %c0_i32_0 = arith.constant 0 : i32
    %c0_i32_1 = arith.constant 0 : i32
    return %2, %c0_i32_0 : i32, i32
  }
  func.func @transform_2(%arg0: i32, %arg1: i32) -> (i32, i32) {
    %c0_i32 = arith.constant 0 : i32
    %c0_i32_0 = arith.constant 0 : i32
    return %arg0, %c0_i32 : i32, i32
  }
}

</mosaic_0001>

<llo_original>
// kernel: rmse_loss.1
$region0: #{rmse_loss.1}
  #allocation0 [shape = 'u32[]', space=smem, size = 0x4, offset = 0x4, fixed_abs, tag = 'smem constant byte address 0x4 - core index']
  #allocation1 [shape = 'u32[144,128]{1,0:T(1,128)}', space=vmem, size = 0x12000, scoped, tag = 'internal scratch']
  #allocation2 [shape = 'f32[8,128]{1,0:T(8,128)}', space=vmem, size = 0x1000, scoped, tag = 'scratch operand']
  %s0 = inlined_call_operand.vmem [shape: f32[32,128], index: 0, kind: input, shape index: {}]
  %s1 = inlined_call_operand.vmem [shape: f32[32,128], index: 1, kind: input, shape index: {}]
  %s2 = inlined_call_operand.hbm [shape: f32[1,1], index: 2, kind: output, shape index: {}]
  %s3 = sld [smem:[#allocation0]]
  $region26: #{rmse_loss.1} parent=0
    _
  %s5 = ssub.s32 1, %s3
  %s6 = scalar_select 0, %s5, %s3
  $region1: #{rmse_loss.1} parent=0
    #allocation3 [shape = 'u8[512]{0}', space=vmem, size = 0x400, scoped, tag = 'output window, operand 0, single buffered']
    #allocation4 [shape = 's32[1]{0}', space=sflag, size = 0x4, scoped, tag = 'scoped memory for rmse_loss.1']
    %7 = vsyncpa [#allocation4], 0
    // Predicated region
    $region2: #{rmse_loss.1} parent=1 // pred_check
      _
    $region3: #{rmse_loss.1} parent=1 // pred_check_branch
      %9 = sbr.rel (0) target = $region5
    $region4: #{rmse_loss.1} parent=1 // pred_region
      %s10 = sadd.s32 0, 0
      %p11 = scmp.lt.s32.totalorder %s10, 0
      %s12 = scalar_select %p11, %s10, 0
      %s13 = smul.u32 4, %s12
      %p14 = scmp.lt.s32.totalorder %s13, 3
      %s15 = scalar_select %p14, %s13, 3
      %s16 = smul.addr %s15, 8
      %s17 = scalar_lea.vmem %s0, %s16
      %s18 = sadd.s32 0, 0
      %p19 = scmp.lt.s32.totalorder %s18, 0
      %s20 = scalar_select %p19, %s18, 0
      %s21 = smul.u32 4, %s20
    $region5: #{rmse_loss.1} parent=1 // pred_fallthru
      _
    // Predicated region
    $region6: #{rmse_loss.1} parent=1 // pred_check
      _
    $region7: #{rmse_loss.1} parent=1 // pred_check_branch
      %23 = sbr.rel (0) target = $region9
    $region8: #{rmse_loss.1} parent=1 // pred_region
      %s24 = sadd.s32 0, 0
      %p25 = scmp.lt.s32.totalorder %s24, 0
      %s26 = scalar_select %p25, %s24, 0
      %s27 = smul.u32 4, %s26
      %p28 = scmp.lt.s32.totalorder %s27, 3
      %s29 = scalar_select %p28, %s27, 3
      %s30 = smul.addr %s29, 8
      %s31 = scalar_lea.vmem %s1, %s30
      %s32 = sadd.s32 0, 0
      %p33 = scmp.lt.s32.totalorder %s32, 0
      %s34 = scalar_select %p33, %s32, 0
      %s35 = smul.u32 4, %s34
    $region9: #{rmse_loss.1} parent=1 // pred_fallthru
      _
    %s36 = sadd.s32 0, 0
    %p37 = scmp.lt.s32.totalorder %s36, 0
    %s38 = scalar_select %p37, %s36, 0
    %s39 = smul.u32 4, %s38
    %p40 = scmp.lt.s32.totalorder %s39, 3
    %s41 = scalar_select %p40, %s39, 3
    %s42 = smul.addr %s41, 8
    %s43 = scalar_lea.vmem %s0, %s42
    %s44 = sadd.s32 0, 0
    %p45 = scmp.lt.s32.totalorder %s44, 0
    %s46 = scalar_select %p45, %s44, 0
    %s47 = smul.u32 4, %s46
    %p48 = scmp.lt.s32.totalorder %s47, 3
    %s49 = scalar_select %p48, %s47, 3
    %s50 = smul.addr %s49, 8
    %s51 = scalar_lea.vmem %s1, %s50
    %s52 = sadd.s32 0, 0
    %p53 = scmp.lt.s32.totalorder %s52, 0
    %s54 = scalar_select %p53, %s52, 0
    %s55 = smul.u32 4, %s54
    %p56 = scmp.lt.s32.totalorder %s55, 3
    %s57 = scalar_select %p56, %s55, 3
    %s58 = smul.addr %s57, 8
    %s59 = scalar_lea.vmem %s0, %s58
    %s60 = sadd.s32 0, 0
    %p61 = scmp.lt.s32.totalorder %s60, 0
    %s62 = scalar_select %p61, %s60, 0
    %s63 = smul.u32 4, %s62
    %s64 = sadd.s32 0, 0
    %p65 = scmp.lt.s32.totalorder %s64, 0
    %s66 = scalar_select %p65, %s64, 0
    %s67 = smul.u32 4, %s66
    %p68 = scmp.lt.s32.totalorder %s67, 3
    %s69 = scalar_select %p68, %s67, 3
    %s70 = smul.addr %s69, 8
    %s71 = scalar_lea.vmem %s1, %s70
    %s72 = sadd.s32 0, 0
    %p73 = scmp.lt.s32.totalorder %s72, 0
    %s74 = scalar_select %p73, %s72, 0
    %s75 = smul.u32 4, %s74
    %p76 = scmp.eq.s32.totalorder 0, 0
    // Predicated region
    $region10: #{rmse_loss.1} parent=1 // pred_check
      %p77 = pneg %p76
    $region11: #{rmse_loss.1} parent=1 // pred_check_branch
      %79 = sbr.rel (%p77) target = $region13
    $region12: #{rmse_loss.1} parent=1 // pred_region
      %80 = vst [vmem:[#allocation2] sm:$0xff] 0.0
    $region13: #{rmse_loss.1} parent=1 // pred_fallthru
      _
    %s81 = sadd.s32 0, 0
    %s82 = smul.u32 %s81, 32
    %v83 = vld [vmem:[%s59] sm:$0xff]
    %v84 = vld [vmem:[%s59 + $0x8] sm:$0xff]
    %v85 = vld [vmem:[%s59 + $0x10] sm:$0xff]
    %v86 = vld [vmem:[%s59 + $0x18] sm:$0xff]
    %v87 = vld [vmem:[%s71] sm:$0xff]
    %v88 = vld [vmem:[%s71 + $0x8] sm:$0xff]
    %v89 = vld [vmem:[%s71 + $0x10] sm:$0xff]
    %v90 = vld [vmem:[%s71 + $0x18] sm:$0xff]
    %v91 = vsub.f32 %v83, %v87
    %v92 = vsub.f32 %v84, %v88
    %v93 = vsub.f32 %v85, %v89
    %v94 = vsub.f32 %v86, %v90
    %v95 = vlaneseq
    %v96 = vshrl.u32 %v95, 7
    %v97 = vadd.s32 %v96, 8
    %v98 = vadd.s32 %v96, 16
    %v99 = vadd.s32 %v96, 24
    %v100 = vstv %s82
    %v101 = vadd.s32 %v100, %v96
    %v102 = vadd.s32 %v100, %v97
    %v103 = vadd.s32 %v100, %v98
    %v104 = vadd.s32 %v100, %v99
    %vm105 = vcmp.lt.s32.totalorder %v101, 32
    %vm106 = vcmp.lt.s32.totalorder %v102, 32
    %vm107 = vcmp.lt.s32.totalorder %v103, 32
    %vm108 = vcmp.lt.s32.totalorder %v104, 32
    %v109 = vmul.f32 %v91, %v91
    %v110 = vmul.f32 %v92, %v92
    %v111 = vmul.f32 %v93, %v93
    %v112 = vmul.f32 %v94, %v94
    %v113 = vsel %vm105, 1, 0
    %v114 = vsel %vm106, 1, 0
    %v115 = vsel %vm107, 1, 0
    %v116 = vsel %vm108, 1, 0
    %vm117 = vcmp.eq.s32.totalorder %v113, 1
    %vm118 = vcmp.eq.s32.totalorder %v114, 1
    %vm119 = vcmp.eq.s32.totalorder %v115, 1
    %vm120 = vcmp.eq.s32.totalorder %v116, 1
    %v121 = vsel %vm117, %v109, 0.0
    %v122 = vsel %vm118, %v110, 0.0
    %v123 = vsel %vm119, %v111, 0.0
    %v124 = vsel %vm120, %v112, 0.0
    %v125 = vld [vmem:[#allocation2] sm:$0xff]
    %v126 = vadd.f32 %v121, %v122
    %v127 = vadd.f32 %v126, %v123
    %v128 = vadd.f32 %v127, %v124
    %v129 = vadd.f32 %v125, %v128
    %130 = vst [vmem:[#allocation2] sm:$0xff] %v129
    // Predicated region
    $region14: #{rmse_loss.1} parent=1 // pred_check
      %p131 = pneg %p76
    $region15: #{rmse_loss.1} parent=1 // pred_check_branch
      %133 = sbr.rel (%p131) target = $region17
    $region16: #{rmse_loss.1} parent=1 // pred_region
      %v134 = vld [vmem:[#allocation2] sm:$0xff]
      %135 = vadd.xlane.f32.xlu0 %v134
      %v136 = vpop.xlane.xlu0 %135
      %v137 = vrot.slane %v136, 4
      %v138 = vadd.f32 %v136, %v137
      %v139 = vrot.slane %v138, 2
      %v140 = vadd.f32 %v138, %v139
      %v141 = vrot.slane %v140, 1
      %v142 = vadd.f32 %v140, %v141
      %s143 = vtos %v142
      %v144 = vstv %s143
      %vm145 = vcmask 0
      %146 = vst.msk [vmem:[#allocation3] sm:$0x1] %vm145, %v144
    $region17: #{rmse_loss.1} parent=1 // pred_fallthru
      _
    // Predicated region
    $region18: #{rmse_loss.1} parent=1 // pred_check
      _
    $region19: #{rmse_loss.1} parent=1 // pred_check_branch
      %148 = sbr.rel (0) target = $region21
    $region20: #{rmse_loss.1} parent=1 // pred_region
      %s150 = ssub.s32 16, 16
      %151 = vsyncadd [#allocation4], %s150
      %s153 = sshll.u32 [#allocation3], 4
      %s154 = int_to_ptr.vmem [resolvable:$true] %s153
      %156 = dma.vmem_to_hbm [thread:$0]  %s154, 16, %s2, [#allocation4]
    $region21: #{rmse_loss.1} parent=1 // pred_fallthru
      _
    // Predicated region
    $region22: #{rmse_loss.1} parent=1 // pred_check
      _
    $region23: #{rmse_loss.1} parent=1 // pred_check_branch
      %158 = sbr.rel (0) target = $region25
    $region24: #{rmse_loss.1} parent=1 // pred_region
      %159 = dma.done [#allocation4], 16
    $region25: #{rmse_loss.1} parent=1 // pred_fallthru
      _
    %160 = vsyncpa [#allocation4], 1

</llo_original>
